<compile_context>
chip_gen: v6e
topology: v6e:2x2x1
jax: 0.10.0
libtpu: 0.0.40
codegen_flags: <defaults>
</compile_context>

<pallas_src>
import jax
import jax.numpy as jnp
from jax.experimental import pallas as pl
from jax.experimental.pallas import tpu as pltpu


def _round_up(x, m):
    return (x + m - 1) // m * m


def _fusion_kernel(img_ref, txt_ref, wi_ref, bi_ref, wt_ref, bt_ref, out_ref):
    k = pl.program_id(1)

    @pl.when(k == 0)
    def _init():
        out_ref[...] = jnp.zeros_like(out_ref)

    # proj_i / proj_t, weight slab k: (Bt, D) @ (D, O_pad), bf16 in / f32 acc.
    zi = jnp.dot(img_ref[...], wi_ref[...],
                 preferred_element_type=jnp.float32) + bi_ref[...]
    zt = jnp.dot(txt_ref[...], wt_ref[...],
                 preferred_element_type=jnp.float32) + bt_ref[...]
    # Elementwise fusion (f32); accumulation across grid axis k == sum-pool*K.
    out_ref[...] += zi * zt

    @pl.when(k == pl.num_programs(1) - 1)
    def _finalize():
        # F.normalize(z, dim=1): z / max(||z||, 1e-12)
        z = out_ref[...]
        sumsq = jnp.sum(z * z, axis=1, keepdims=True)
        out_ref[...] = z * jax.lax.rsqrt(jnp.maximum(sumsq, 1e-24))


def _pack_linear(w, b, K, O, O_pad, w_dtype):
    """Repack (in, K*O) col o*K+k -> (in, K*O_pad) col k*O_pad+o, zero-padded."""
    d_in = w.shape[0]
    w3 = w.reshape(d_in, O, K).transpose(0, 2, 1)              # (in, K, O)
    w3 = jnp.pad(w3, ((0, 0), (0, 0), (0, O_pad - O)))
    b2 = b.reshape(O, K).transpose(1, 0)                       # (K, O)
    b2 = jnp.pad(b2, ((0, 0), (0, O_pad - O)))
    return (w3.reshape(d_in, K * O_pad).astype(w_dtype),
            b2.reshape(1, K * O_pad).astype(jnp.float32))


def fusion_forward(img_feat, txt_feat, wi, bi, wt, bt, K, O):
    """img_feat: (B, Di), txt_feat: (B, Dt) -> (B, 1, O) float32."""
    B, Di = img_feat.shape
    _, Dt = txt_feat.shape

    # Lane-dense output: pad O to a multiple of 128 (sliced off below).
    O_pad = _round_up(O, 128)
    # Batch tiling: >=16 sublanes (bf16-friendly), up to 256 rows per tile.
    B_tile = min(256, _round_up(B, 16))
    B_pad = _round_up(B, B_tile)

    wi_p, bi_p = _pack_linear(wi, bi, K, O, O_pad, jnp.bfloat16)
    wt_p, bt_p = _pack_linear(wt, bt, K, O, O_pad, jnp.bfloat16)

    img_p = jnp.pad(img_feat, ((0, B_pad - B), (0, 0))).astype(jnp.bfloat16)
    txt_p = jnp.pad(txt_feat, ((0, B_pad - B), (0, 0))).astype(jnp.bfloat16)

    # Explicit VMEM budget: double-buffered activations, weight/bias slabs and
    # output tile, plus live f32 intermediates, with 2x headroom (>= 32 MiB).
    needed = (2 * (B_tile * (Di + Dt) * 2            # bf16 activation tiles
                   + (Di + Dt) * O_pad * 2           # bf16 weight slabs
                   + 2 * O_pad * 4                   # f32 bias slabs
                   + B_tile * O_pad * 4)             # f32 output tile
              + 4 * B_tile * O_pad * 4)              # zi/zt/partial live f32
    vmem_limit = int(min(max(2 * needed + (1 << 20), 32 << 20), 100 << 20))

    grid = (B_pad // B_tile, K)
    out = pl.pallas_call(
        _fusion_kernel,
        out_shape=jax.ShapeDtypeStruct((B_pad, O_pad), jnp.float32),
        grid=grid,
        in_specs=[
            pl.BlockSpec((B_tile, Di), lambda i, k: (i, 0)),
            pl.BlockSpec((B_tile, Dt), lambda i, k: (i, 0)),
            pl.BlockSpec((Di, O_pad), lambda i, k: (0, k)),
            pl.BlockSpec((1, O_pad), lambda i, k: (0, k)),
            pl.BlockSpec((Dt, O_pad), lambda i, k: (0, k)),
            pl.BlockSpec((1, O_pad), lambda i, k: (0, k)),
        ],
        out_specs=pl.BlockSpec((B_tile, O_pad), lambda i, k: (i, 0)),
        compiler_params=pltpu.CompilerParams(
            dimension_semantics=("parallel", "arbitrary"),
            vmem_limit_bytes=vmem_limit),
    )(img_p, txt_p, wi_p, bi_p, wt_p, bt_p)

    # Slice off lane/batch padding; z.view(batch_size, -1, O) -> (B, 1, O).
    return out[:B, :O].reshape(B, -1, O)


if __name__ == "__main__":
    # Small, module-consistent shapes.
    B = 4                  # batch_size
    IMG_FEAT = 32          # img_feat_size
    TXT_FEAT = 32          # txt_feat_size
    K = 4
    O = 8

    key = jax.random.PRNGKey(0)
    k_img, k_txt, k_wi, k_bi, k_wt, k_bt = jax.random.split(key, 6)

    img_feat = jax.random.normal(k_img, (B, IMG_FEAT), dtype=jnp.float32)
    txt_feat = jax.random.normal(k_txt, (B, TXT_FEAT), dtype=jnp.float32)

    # Deterministic synthetic parameters (stored as (in, out), i.e. W.T).
    wi = jax.random.normal(k_wi, (IMG_FEAT, K * O), dtype=jnp.float32) * 0.05
    bi = jax.random.normal(k_bi, (K * O,), dtype=jnp.float32) * 0.05
    wt = jax.random.normal(k_wt, (TXT_FEAT, K * O), dtype=jnp.float32) * 0.05
    bt = jax.random.normal(k_bt, (K * O,), dtype=jnp.float32) * 0.05

    z = fusion_forward(img_feat, txt_feat, wi, bi, wt, bt, K, O)
    jax.block_until_ready(z)
    assert z.shape == (B, 1, O), z.shape

    # Pure-JAX reference (f32) — loose tolerance for bf16 matmul operands.
    zi_ref = img_feat @ wi + bi
    zt_ref = txt_feat @ wt + bt
    e_ref = zi_ref * zt_ref
    pooled = e_ref.reshape(B, O, K).sum(axis=-1)          # AvgPool1d(K)*K
    nrm = jnp.maximum(jnp.sqrt(jnp.sum(pooled * pooled, axis=1, keepdims=True)),
                      1e-12)
    ref = (pooled / nrm).reshape(B, 1, O)
    assert jnp.allclose(z, ref, atol=5e-2, rtol=5e-2), \
        float(jnp.max(jnp.abs(z - ref)))

    print("KERNEL_OK")
</pallas_src>

<mosaic_0001>
module attributes {stable_mosaic.version = 11 : i64} {
  func.func @_fusion_kernel(%arg0: i32, %arg1: i32, %arg2: memref<16x32xbf16, #tpu.memory_space<vmem>>, %arg3: memref<16x32xbf16, #tpu.memory_space<vmem>>, %arg4: memref<32x128xbf16, #tpu.memory_space<vmem>>, %arg5: memref<1x128xf32, #tpu.memory_space<vmem>>, %arg6: memref<32x128xbf16, #tpu.memory_space<vmem>>, %arg7: memref<1x128xf32, #tpu.memory_space<vmem>>, %arg8: memref<16x128xf32, #tpu.memory_space<vmem>>) attributes {dimension_semantics = [#tpu.dimension_semantics<parallel>, #tpu.dimension_semantics<arbitrary>], iteration_bounds = array<i64: 1, 4>, scalar_prefetch = 0 : i64, scratch_operands = 0 : i64, tpu.core_type = #tpu.core_type<tc>, window_params = [{transform_indices = @transform_0, window_bounds = array<i64: 16, 32>}, {transform_indices = @transform_1, window_bounds = array<i64: 16, 32>}, {transform_indices = @transform_2, window_bounds = array<i64: 32, 128>}, {transform_indices = @transform_3, window_bounds = array<i64: 1, 128>}, {transform_indices = @transform_4, window_bounds = array<i64: 32, 128>}, {transform_indices = @transform_5, window_bounds = array<i64: 1, 128>}, {transform_indices = @transform_6, window_bounds = array<i64: 16, 128>}]} {
    %c0_i32 = arith.constant 0 : i32
    %0 = arith.cmpi eq, %arg1, %c0_i32 : i32
    %1 = arith.extui %0 : i1 to i32
    %c0_i32_0 = arith.constant 0 : i32
    %2 = arith.cmpi ne, %1, %c0_i32_0 : i32
    scf.if %2 {
      %cst_18 = arith.constant 0.000000e+00 : f32
      %22 = vector.broadcast %cst_18 : f32 to vector<16x128xf32>
      %c0_19 = arith.constant 0 : index
      %c0_20 = arith.constant 0 : index
      %23 = vector.load %arg8[%c0_19, %c0_20] : memref<16x128xf32, #tpu.memory_space<vmem>>, vector<16x128xf32>
      tpu.vector_store %arg8[%c0_19, %c0_20], %22 {strides = array<i32>} : memref<16x128xf32, #tpu.memory_space<vmem>>, vector<16x128xf32>,
    } else {
    }
    %c0 = arith.constant 0 : index
    %c0_1 = arith.constant 0 : index
    %3 = vector.load %arg2[%c0, %c0_1] : memref<16x32xbf16, #tpu.memory_space<vmem>>, vector<16x32xbf16>
    %c0_2 = arith.constant 0 : index
    %c0_3 = arith.constant 0 : index
    %4 = vector.load %arg4[%c0_2, %c0_3] : memref<32x128xbf16, #tpu.memory_space<vmem>>, vector<32x128xbf16>
    %cst = arith.constant dense<0.000000e+00> : vector<16x128xf32>
    %5 = tpu.matmul %3, %4, %cst {dimension_numbers = #tpu.dot_dimension_numbers<[1], [0], [0], [1], [0, 0, 1, 1], [], []>} : vector<16x32xbf16>, vector<32x128xbf16>, vector<16x128xf32> -> vector<16x128xf32>
    %c0_4 = arith.constant 0 : index
    %c0_5 = arith.constant 0 : index
    %6 = vector.load %arg5[%c0_4, %c0_5] : memref<1x128xf32, #tpu.memory_space<vmem>>, vector<1x128xf32>
    %7 = vector.broadcast %6 : vector<1x128xf32> to vector<16x128xf32>
    %8 = arith.addf %5, %7 : vector<16x128xf32>
    %c0_6 = arith.constant 0 : index
    %c0_7 = arith.constant 0 : index
    %9 = vector.load %arg3[%c0_6, %c0_7] : memref<16x32xbf16, #tpu.memory_space<vmem>>, vector<16x32xbf16>
    %c0_8 = arith.constant 0 : index
    %c0_9 = arith.constant 0 : index
    %10 = vector.load %arg6[%c0_8, %c0_9] : memref<32x128xbf16, #tpu.memory_space<vmem>>, vector<32x128xbf16>
    %cst_10 = arith.constant dense<0.000000e+00> : vector<16x128xf32>
    %11 = tpu.matmul %9, %10, %cst_10 {dimension_numbers = #tpu.dot_dimension_numbers<[1], [0], [0], [1], [0, 0, 1, 1], [], []>} : vector<16x32xbf16>, vector<32x128xbf16>, vector<16x128xf32> -> vector<16x128xf32>
    %c0_11 = arith.constant 0 : index
    %c0_12 = arith.constant 0 : index
    %12 = vector.load %arg7[%c0_11, %c0_12] : memref<1x128xf32, #tpu.memory_space<vmem>>, vector<1x128xf32>
    %13 = vector.broadcast %12 : vector<1x128xf32> to vector<16x128xf32>
    %14 = arith.addf %11, %13 : vector<16x128xf32>
    %c0_13 = arith.constant 0 : index
    %c0_14 = arith.constant 0 : index
    %15 = vector.load %arg8[%c0_13, %c0_14] : memref<16x128xf32, #tpu.memory_space<vmem>>, vector<16x128xf32>
    %16 = arith.mulf %8, %14 : vector<16x128xf32>
    %17 = arith.addf %15, %16 : vector<16x128xf32>
    %c0_15 = arith.constant 0 : index
    %c0_16 = arith.constant 0 : index
    %18 = vector.load %arg8[%c0_15, %c0_16] : memref<16x128xf32, #tpu.memory_space<vmem>>, vector<16x128xf32>
    tpu.vector_store %arg8[%c0_15, %c0_16], %17 {strides = array<i32>} : memref<16x128xf32, #tpu.memory_space<vmem>>, vector<16x128xf32>,
    %c3_i32 = arith.constant 3 : i32
    %19 = arith.cmpi eq, %arg1, %c3_i32 : i32
    %20 = arith.extui %19 : i1 to i32
    %c0_i32_17 = arith.constant 0 : i32
    %21 = arith.cmpi ne, %20, %c0_i32_17 : i32
    scf.if %21 {
      %c0_18 = arith.constant 0 : index
      %c0_19 = arith.constant 0 : index
      %22 = vector.load %arg8[%c0_18, %c0_19] : memref<16x128xf32, #tpu.memory_space<vmem>>, vector<16x128xf32>
      %23 = arith.mulf %22, %22 : vector<16x128xf32>
      %cst_20 = arith.constant dense<0.000000e+00> : vector<16xf32>
      %24 = vector.multi_reduction <add>, %23, %cst_20 [1] : vector<16x128xf32> to vector<16xf32>
      %25 = vector.shape_cast %24 : vector<16xf32> to vector<16x1xf32>
      %cst_21 = arith.constant 1.000000e-24 : f32
      %26 = vector.broadcast %cst_21 : f32 to vector<16x1xf32>
      %27 = arith.maximumf %25, %26 : vector<16x1xf32>
      %28 = math.rsqrt %27 : vector<16x1xf32>
      %29 = vector.broadcast %28 : vector<16x1xf32> to vector<16x128xf32>
      %30 = arith.mulf %22, %29 : vector<16x128xf32>
      %c0_22 = arith.constant 0 : index
      %c0_23 = arith.constant 0 : index
      %31 = vector.load %arg8[%c0_22, %c0_23] : memref<16x128xf32, #tpu.memory_space<vmem>>, vector<16x128xf32>
      tpu.vector_store %arg8[%c0_22, %c0_23], %30 {strides = array<i32>} : memref<16x128xf32, #tpu.memory_space<vmem>>, vector<16x128xf32>,
    } else {
    }
    return
  }
  func.func @transform_0(%arg0: i32, %arg1: i32) -> (i32, i32) {
    %c0_i32 = arith.constant 0 : i32
    %c0_i32_0 = arith.constant 0 : i32
    return %arg0, %c0_i32 : i32, i32
  }
  func.func @transform_1(%arg0: i32, %arg1: i32) -> (i32, i32) {
    %c0_i32 = arith.constant 0 : i32
    %c0_i32_0 = arith.constant 0 : i32
    return %arg0, %c0_i32 : i32, i32
  }
  func.func @transform_2(%arg0: i32, %arg1: i32) -> (i32, i32) {
    %c0_i32 = arith.constant 0 : i32
    %c0_i32_0 = arith.constant 0 : i32
    return %c0_i32, %arg1 : i32, i32
  }
  func.func @transform_3(%arg0: i32, %arg1: i32) -> (i32, i32) {
    %c0_i32 = arith.constant 0 : i32
    %c0_i32_0 = arith.constant 0 : i32
    return %c0_i32, %arg1 : i32, i32
  }
  func.func @transform_4(%arg0: i32, %arg1: i32) -> (i32, i32) {
    %c0_i32 = arith.constant 0 : i32
    %c0_i32_0 = arith.constant 0 : i32
    return %c0_i32, %arg1 : i32, i32
  }
  func.func @transform_5(%arg0: i32, %arg1: i32) -> (i32, i32) {
    %c0_i32 = arith.constant 0 : i32
    %c0_i32_0 = arith.constant 0 : i32
    return %c0_i32, %arg1 : i32, i32
  }
  func.func @transform_6(%arg0: i32, %arg1: i32) -> (i32, i32) {
    %c0_i32 = arith.constant 0 : i32
    %c0_i32_0 = arith.constant 0 : i32
    return %arg0, %c0_i32 : i32, i32
  }
}

</mosaic_0001>

<llo_original>
// kernel: tpu_custom_call.1
$region0: #{tpu_custom_call.1}
  #allocation0 [shape = 'u32[]', space=smem, size = 0x4, offset = 0x4, fixed_abs, tag = 'smem constant byte address 0x4 - core index']
  #allocation1 [shape = 'u32[144,128]{1,0:T(1,128)}', space=vmem, size = 0x12000, scoped, tag = 'internal scratch']
  %s0 = inlined_call_operand.hbm [shape: bf16[16,32], index: 0, kind: input, shape index: {}]
  %s1 = inlined_call_operand.hbm [shape: bf16[16,32], index: 1, kind: input, shape index: {}]
  %s2 = inlined_call_operand.hbm [shape: bf16[32,512], index: 2, kind: input, shape index: {}]
  %s3 = inlined_call_operand.vmem [shape: f32[1,512], index: 3, kind: input, shape index: {}]
  %s4 = inlined_call_operand.hbm [shape: bf16[32,512], index: 4, kind: input, shape index: {}]
  %s5 = inlined_call_operand.vmem [shape: f32[1,512], index: 5, kind: input, shape index: {}]
  %s6 = inlined_call_operand.hbm [shape: f32[16,128], index: 6, kind: output, shape index: {}]
  %s7 = sld [smem:[#allocation0]]
  $region81: #{tpu_custom_call.1} parent=0
    _
  %s9 = ssub.s32 1, %s7
  %s10 = scalar_select 0, %s9, %s7
  $region1: #{tpu_custom_call.1} parent=0
    #allocation2 [shape = 'u8[4096]{0}', space=vmem, size = 0x1000, scoped, tag = 'input window, operand 0, single buffered']
    #allocation3 [shape = 's32[2]{0}', space=sflag, size = 0x8, scoped, tag = 'scoped memory for tpu_custom_call.1']
    #allocation4 [shape = 's32[2]{0}', space=sflag, size = 0x8, scoped, tag = 'scoped memory for tpu_custom_call.1']
    #allocation5 [shape = 'u8[4096]{0}', space=vmem, size = 0x1000, scoped, tag = 'input window, operand 1, single buffered']
    #allocation6 [shape = 's32[1]{0}', space=sflag, size = 0x4, scoped, tag = 'scoped memory for tpu_custom_call.1']
    #allocation7 [shape = 'u8[16384]{0}', space=vmem, size = 0x4000, scoped, tag = 'input window, operand 2']
    #allocation8 [shape = 'u8[16384]{0}', space=vmem, size = 0x4000, scoped, tag = 'input window, operand 4']
    #allocation9 [shape = 'u8[8192]{0}', space=vmem, size = 0x2000, scoped, tag = 'output window, operand 0, single buffered']
    %11 = vsyncpa [#allocation3], 0
    %12 = vsyncpa [#allocation6], 0
    %13 = vsyncpa [#allocation4], 0
    loop: start=0, step=1, limit=6
    $region2: #{tpu_custom_call.1} parent=1 // loop_pre_header
      _
    $region3: #{tpu_custom_call.1} parent=1 // loop_header
      %s15 = sphi 0, %s19
      %p16 = scmp.ge.s32.totalorder %s15, 6
      %s22 = sphi 0, %s34
      %s23 = sphi 0, %s30
      %s24 = sphi 0, %s22
      %s25 = sphi 0, %s23
      %s26 = sphi 0, %s24
      %s27 = sphi 0, %s25
      %s37 = sphi 0, %s39
      %s40 = sphi 0, %s37
      %s41 = sphi 0, %s40
      %s57 = sphi 0, %s41
      %s63 = sphi 0, %s65
      %s66 = sphi 0, %s63
      %s67 = sphi 0, %s66
      %s83 = sphi 0, %s67
      %s89 = sphi 0, %s91
      %s92 = sphi 0, %s89
      %s93 = sphi 0, %s92
      %s109 = sphi 0, %s93
      %s115 = sphi 0, %s117
      %s118 = sphi 0, %s115
      %s119 = sphi 0, %s118
      %s135 = sphi 0, %s119
      %s141 = sphi 0, %s143
      %s144 = sphi 0, %s141
      %s145 = sphi 0, %s144
      %s161 = sphi 0, %s145
      %s167 = sphi 0, %s169
      %s170 = sphi 0, %s167
      %s171 = sphi 0, %s170
      %s187 = sphi 0, %s171
      %s193 = sphi 0, %s195
      %s196 = sphi 0, %s193
      %s197 = sphi 0, %s196
      %s213 = sphi 0, %s197
    $region4: #{tpu_custom_call.1} parent=1 // loop_header_branch
      %18 = sbr.rel (%p16) target = $region8
    $region5: #{tpu_custom_call.1} parent=1 // loop_body
      %s20 = ssub.s32 %s15, 1
      %s21 = ssub.s32 %s15, 2
      %s28 = sadd.s32 1, %s23
      %p29 = scmp.ge.s32.totalorder %s28, 4
      %s30 = scalar_select %p29, 0, %s28
      %s31 = sadd.s32 1, %s22
      %s32 = scalar_select %p29, %s31, %s22
      %p33 = scmp.ge.s32.totalorder %s32, 1
      %s34 = scalar_select %p33, 0, %s32
      %s35 = ssub.s32 %s22, %s34
      %p36 = scmp.eq.s32.totalorder %s35, 0
      %s38 = sadd.s32 %s37, 1
      %s39 = scalar_select %p36, %s37, %s38
      %p42 = pneg %p36
      %p43 = scmp.eq.s32.totalorder %s15, 3
      %p44 = por %p42, %p43
      %p45 = scmp.ne.s32.totalorder %s37, %s40
      %p46 = scmp.eq.s32.totalorder %s15, 0
      %p47 = por %p45, %p46
      %p48 = scmp.ne.s32.totalorder %s37, %s40
      %p49 = scmp.eq.s32.totalorder %s20, 3
      %p50 = por %p48, %p49
      %p51 = scmp.ne.s32.totalorder %s40, %s41
      %p52 = scmp.eq.s32.totalorder %s20, 0
      %p53 = por %p51, %p52
      %p54 = scmp.ne.s32.totalorder %s40, %s41
      %p55 = scmp.eq.s32.totalorder %s21, 3
      %p56 = por %p54, %p55
      %p58 = scmp.ne.s32.totalorder %s41, %s57
      %p59 = scmp.eq.s32.totalorder %s21, 0
      %p60 = por %p58, %p59
      %s61 = ssub.s32 %s22, %s34
      %p62 = scmp.eq.s32.totalorder %s61, 0
      %s64 = sadd.s32 %s63, 1
      %s65 = scalar_select %p62, %s63, %s64
      %p68 = pneg %p62
      %p69 = scmp.eq.s32.totalorder %s15, 3
      %p70 = por %p68, %p69
      %p71 = scmp.ne.s32.totalorder %s63, %s66
      %p72 = scmp.eq.s32.totalorder %s15, 0
      %p73 = por %p71, %p72
      %p74 = scmp.ne.s32.totalorder %s63, %s66
      %p75 = scmp.eq.s32.totalorder %s20, 3
      %p76 = por %p74, %p75
      %p77 = scmp.ne.s32.totalorder %s66, %s67
      %p78 = scmp.eq.s32.totalorder %s20, 0
      %p79 = por %p77, %p78
      %p80 = scmp.ne.s32.totalorder %s66, %s67
      %p81 = scmp.eq.s32.totalorder %s21, 3
      %p82 = por %p80, %p81
      %p84 = scmp.ne.s32.totalorder %s67, %s83
      %p85 = scmp.eq.s32.totalorder %s21, 0
      %p86 = por %p84, %p85
      %s87 = ssub.s32 %s23, %s30
      %p88 = scmp.eq.s32.totalorder %s87, 0
      %s90 = sadd.s32 %s89, 1
      %s91 = scalar_select %p88, %s89, %s90
      %p94 = pneg %p88
      %p95 = scmp.eq.s32.totalorder %s15, 3
      %p96 = por %p94, %p95
      %p97 = scmp.ne.s32.totalorder %s89, %s92
      %p98 = scmp.eq.s32.totalorder %s15, 0
      %p99 = por %p97, %p98
      %p100 = scmp.ne.s32.totalorder %s89, %s92
      %p101 = scmp.eq.s32.totalorder %s20, 3
      %p102 = por %p100, %p101
      %p103 = scmp.ne.s32.totalorder %s92, %s93
      %p104 = scmp.eq.s32.totalorder %s20, 0
      %p105 = por %p103, %p104
      %p106 = scmp.ne.s32.totalorder %s92, %s93
      %p107 = scmp.eq.s32.totalorder %s21, 3
      %p108 = por %p106, %p107
      %p110 = scmp.ne.s32.totalorder %s93, %s109
      %p111 = scmp.eq.s32.totalorder %s21, 0
      %p112 = por %p110, %p111
      %s113 = ssub.s32 %s23, %s30
      %p114 = scmp.eq.s32.totalorder %s113, 0
      %s116 = sadd.s32 %s115, 1
      %s117 = scalar_select %p114, %s115, %s116
      %p120 = pneg %p114
      %p121 = scmp.eq.s32.totalorder %s15, 3
      %p122 = por %p120, %p121
      %p123 = scmp.ne.s32.totalorder %s115, %s118
      %p124 = scmp.eq.s32.totalorder %s15, 0
      %p125 = por %p123, %p124
      %p126 = scmp.ne.s32.totalorder %s115, %s118
      %p127 = scmp.eq.s32.totalorder %s20, 3
      %p128 = por %p126, %p127
      %p129 = scmp.ne.s32.totalorder %s118, %s119
      %p130 = scmp.eq.s32.totalorder %s20, 0
      %p131 = por %p129, %p130
      %p132 = scmp.ne.s32.totalorder %s118, %s119
      %p133 = scmp.eq.s32.totalorder %s21, 3
      %p134 = por %p132, %p133
      %p136 = scmp.ne.s32.totalorder %s119, %s135
      %p137 = scmp.eq.s32.totalorder %s21, 0
      %p138 = por %p136, %p137
      %s139 = ssub.s32 %s23, %s30
      %p140 = scmp.eq.s32.totalorder %s139, 0
      %s142 = sadd.s32 %s141, 1
      %s143 = scalar_select %p140, %s141, %s142
      %p146 = pneg %p140
      %p147 = scmp.eq.s32.totalorder %s15, 3
      %p148 = por %p146, %p147
      %p149 = scmp.ne.s32.totalorder %s141, %s144
      %p150 = scmp.eq.s32.totalorder %s15, 0
      %p151 = por %p149, %p150
      %p152 = scmp.ne.s32.totalorder %s141, %s144
      %p153 = scmp.eq.s32.totalorder %s20, 3
      %p154 = por %p152, %p153
      %p155 = scmp.ne.s32.totalorder %s144, %s145
      %p156 = scmp.eq.s32.totalorder %s20, 0
      %p157 = por %p155, %p156
      %p158 = scmp.ne.s32.totalorder %s144, %s145
      %p159 = scmp.eq.s32.totalorder %s21, 3
      %p160 = por %p158, %p159
      %p162 = scmp.ne.s32.totalorder %s145, %s161
      %p163 = scmp.eq.s32.totalorder %s21, 0
      %p164 = por %p162, %p163
      %s165 = ssub.s32 %s23, %s30
      %p166 = scmp.eq.s32.totalorder %s165, 0
      %s168 = sadd.s32 %s167, 1
      %s169 = scalar_select %p166, %s167, %s168
      %p172 = pneg %p166
      %p173 = scmp.eq.s32.totalorder %s15, 3
      %p174 = por %p172, %p173
      %p175 = scmp.ne.s32.totalorder %s167, %s170
      %p176 = scmp.eq.s32.totalorder %s15, 0
      %p177 = por %p175, %p176
      %p178 = scmp.ne.s32.totalorder %s167, %s170
      %p179 = scmp.eq.s32.totalorder %s20, 3
      %p180 = por %p178, %p179
      %p181 = scmp.ne.s32.totalorder %s170, %s171
      %p182 = scmp.eq.s32.totalorder %s20, 0
      %p183 = por %p181, %p182
      %p184 = scmp.ne.s32.totalorder %s170, %s171
      %p185 = scmp.eq.s32.totalorder %s21, 3
      %p186 = por %p184, %p185
      %p188 = scmp.ne.s32.totalorder %s171, %s187
      %p189 = scmp.eq.s32.totalorder %s21, 0
      %p190 = por %p188, %p189
      %s191 = ssub.s32 %s22, %s34
      %p192 = scmp.eq.s32.totalorder %s191, 0
      %s194 = sadd.s32 %s193, 1
      %s195 = scalar_select %p192, %s193, %s194
      %p198 = pneg %p192
      %p199 = scmp.eq.s32.totalorder %s15, 3
      %p200 = por %p198, %p199
      %p201 = scmp.ne.s32.totalorder %s193, %s196
      %p202 = scmp.eq.s32.totalorder %s15, 0
      %p203 = por %p201, %p202
      %p204 = scmp.ne.s32.totalorder %s193, %s196
      %p205 = scmp.eq.s32.totalorder %s20, 3
      %p206 = por %p204, %p205
      %p207 = scmp.ne.s32.totalorder %s196, %s197
      %p208 = scmp.eq.s32.totalorder %s20, 0
      %p209 = por %p207, %p208
      %p210 = scmp.ne.s32.totalorder %s196, %s197
      %p211 = scmp.eq.s32.totalorder %s21, 3
      %p212 = por %p210, %p211
      %p214 = scmp.ne.s32.totalorder %s197, %s213
      %p215 = scmp.eq.s32.totalorder %s21, 0
      %p216 = por %p214, %p215
      %p217 = scmp.le.s32.totalorder 1, %s15
      %p218 = scmp.lt.s32.totalorder %s15, 5
      %p219 = pnand %p217, %p218
      %p220 = pneg %p219
      // Predicated region
      $region9: #{tpu_custom_call.1} parent=5 // pred_check
        _
      $region10: #{tpu_custom_call.1} parent=5 // pred_check_branch
        %222 = sbr.rel (%p219) target = $region12
      $region11: #{tpu_custom_call.1} parent=5 // pred_region
        %s223 = ssub.s32 %s15, 1
        // Predicated region
        $region13: #{tpu_custom_call.1} parent=11 // pred_check
          %p224 = pneg %p53
        $region14: #{tpu_custom_call.1} parent=11 // pred_check_branch
          %226 = sbr.rel (%p224) target = $region16
        $region15: #{tpu_custom_call.1} parent=11 // pred_region
          %s227 = smul.u32 2, %s24
          %s229 = ssub.s32 128, 128
          %230 = vsyncadd [#allocation3], %s229
          %s231 = smul.addr %s227, 64
          %s232 = scalar_lea.hbm %s0, %s231
          %s233 = sshll.u32 [#allocation2], 4
          %s234 = int_to_ptr.vmem [resolvable:$true] %s233
          %239 = dma.hbm_to_vmem [thread:$0]  %s232, 128, %s234, [#allocation3], 64, 64, 4
        $region16: #{tpu_custom_call.1} parent=11 // pred_fallthru
          _
        // Predicated region
        $region17: #{tpu_custom_call.1} parent=11 // pred_check
          %p240 = pneg %p79
        $region18: #{tpu_custom_call.1} parent=11 // pred_check_branch
          %242 = sbr.rel (%p240) target = $region20
        $region19: #{tpu_custom_call.1} parent=11 // pred_region
          %s243 = smul.u32 2, %s24
          %s245 = ssub.s32 128, 128
          %246 = vsyncadd [#allocation6], %s245
          %s247 = smul.addr %s243, 64
          %s248 = scalar_lea.hbm %s1, %s247
          %s249 = sshll.u32 [#allocation5], 4
          %s250 = int_to_ptr.vmem [resolvable:$true] %s249
          %255 = dma.hbm_to_vmem [thread:$0]  %s248, 128, %s250, [#allocation6], 64, 64, 4
        $region20: #{tpu_custom_call.1} parent=11 // pred_fallthru
          _
      $region12: #{tpu_custom_call.1} parent=5 // pred_fallthru
        _
      %p256 = scmp.lt.s32.totalorder %s15, 4
      // Predicated region
      $region21: #{tpu_custom_call.1} parent=5 // pred_check
        %p257 = pneg %p256
      $region22: #{tpu_custom_call.1} parent=5 // pred_check_branch
        %259 = sbr.rel (%p257) target = $region24
      $region23: #{tpu_custom_call.1} parent=5 // pred_region
        // Predicated region
        $region25: #{tpu_custom_call.1} parent=23 // pred_check
          %p260 = pneg %p99
        $region26: #{tpu_custom_call.1} parent=23 // pred_check_branch
          %262 = sbr.rel (%p260) target = $region28
        $region27: #{tpu_custom_call.1} parent=23 // pred_region
          %s263 = sand.u32 %s15, 1
          %s264 = scalar_lea.sflag [#allocation3], %s263
          %s265 = sand.u32 %s89, 1
          %s266 = smul.addr %s265, 16
          %s267 = scalar_lea.vmem [#allocation7], %s266
          %s269 = ssub.s32 256, 256
          %270 = vsyncadd %s264, %s269
          %s271 = smul.addr %s23, 64
          %s272 = scalar_lea.hbm %s2, %s271
          %s273 = sshll.u32 %s267, 4
          %s274 = int_to_ptr.vmem [resolvable:$true] %s273
          %279 = dma.hbm_to_vmem [thread:$0]  %s272, 256, %s274, %s264, 256, 64, 4
        $region28: #{tpu_custom_call.1} parent=23 // pred_fallthru
          _
        // Predicated region
        $region29: #{tpu_custom_call.1} parent=23 // pred_check
          %p280 = pneg %p125
        $region30: #{tpu_custom_call.1} parent=23 // pred_check_branch
          %282 = sbr.rel (%p280) target = $region32
        $region31: #{tpu_custom_call.1} parent=23 // pred_region
          %p283 = scmp.lt.s32.totalorder %s23, 3
          %s284 = scalar_select %p283, %s23, 3
          %s285 = scalar_lea.vmem %s3, %s284
        $region32: #{tpu_custom_call.1} parent=23 // pred_fallthru
          _
        // Predicated region
        $region33: #{tpu_custom_call.1} parent=23 // pred_check
          %p286 = pneg %p151
        $region34: #{tpu_custom_call.1} parent=23 // pred_check_branch
          %288 = sbr.rel (%p286) target = $region36
        $region35: #{tpu_custom_call.1} parent=23 // pred_region
          %s289 = sand.u32 %s15, 1
          %s290 = scalar_lea.sflag [#allocation3], %s289
          %s291 = sand.u32 %s141, 1
          %s292 = smul.addr %s291, 16
          %s293 = scalar_lea.vmem [#allocation8], %s292
          %s295 = ssub.s32 256, 256
          %296 = vsyncadd %s290, %s295
          %s297 = smul.addr %s23, 64
          %s298 = scalar_lea.hbm %s4, %s297
          %s299 = sshll.u32 %s293, 4
          %s300 = int_to_ptr.vmem [resolvable:$true] %s299
          %305 = dma.hbm_to_vmem [thread:$0]  %s298, 256, %s300, %s290, 256, 64, 4
        $region36: #{tpu_custom_call.1} parent=23 // pred_fallthru
          _
        // Predicated region
        $region37: #{tpu_custom_call.1} parent=23 // pred_check
          %p306 = pneg %p177
        $region38: #{tpu_custom_call.1} parent=23 // pred_check_branch
          %308 = sbr.rel (%p306) target = $region40
        $region39: #{tpu_custom_call.1} parent=23 // pred_region
          %p309 = scmp.lt.s32.totalorder %s23, 3
          %s310 = scalar_select %p309, %s23, 3
          %s311 = scalar_lea.vmem %s5, %s310
        $region40: #{tpu_custom_call.1} parent=23 // pred_fallthru
          _
      $region24: #{tpu_custom_call.1} parent=5 // pred_fallthru
        _
      %p312 = scmp.le.s32.totalorder 1, %s15
      %p313 = scmp.lt.s32.totalorder %s15, 5
      %p314 = pnand %p312, %p313
      %p315 = pneg %p314
      // Predicated region
      $region41: #{tpu_custom_call.1} parent=5 // pred_check
        _
      $region42: #{tpu_custom_call.1} parent=5 // pred_check_branch
        %317 = sbr.rel (%p314) target = $region44
      $region43: #{tpu_custom_call.1} parent=5 // pred_region
        %s318 = ssub.s32 %s15, 1
        // Predicated region
        $region45: #{tpu_custom_call.1} parent=43 // pred_check
          %p319 = pneg %p53
        $region46: #{tpu_custom_call.1} parent=43 // pred_check_branch
          %321 = sbr.rel (%p319) target = $region48
        $region47: #{tpu_custom_call.1} parent=43 // pred_region
          %322 = dma.done [#allocation3], 128
        $region48: #{tpu_custom_call.1} parent=43 // pred_fallthru
          _
        // Predicated region
        $region49: #{tpu_custom_call.1} parent=43 // pred_check
          %p323 = pneg %p79
        $region50: #{tpu_custom_call.1} parent=43 // pred_check_branch
          %325 = sbr.rel (%p323) target = $region52
        $region51: #{tpu_custom_call.1} parent=43 // pred_region
          %326 = dma.done [#allocation6], 128
        $region52: #{tpu_custom_call.1} parent=43 // pred_fallthru
          _
        %s327 = sand.u32 %s20, 1
        %s328 = scalar_lea.sflag [#allocation3], %s327
        %s329 = sand.u32 %s92, 1
        %s330 = smul.addr %s329, 16
        %s331 = scalar_lea.vmem [#allocation7], %s330
        // Predicated region
        $region53: #{tpu_custom_call.1} parent=43 // pred_check
          %p332 = pneg %p105
        $region54: #{tpu_custom_call.1} parent=43 // pred_check_branch
          %334 = sbr.rel (%p332) target = $region56
        $region55: #{tpu_custom_call.1} parent=43 // pred_region
          %335 = dma.done %s328, 256
        $region56: #{tpu_custom_call.1} parent=43 // pred_fallthru
          _
        %s336 = sand.u32 %s20, 1
        %s337 = scalar_lea.sflag [#allocation3], %s336
        %s338 = sand.u32 %s144, 1
        %s339 = smul.addr %s338, 16
        %s340 = scalar_lea.vmem [#allocation8], %s339
        // Predicated region
        $region57: #{tpu_custom_call.1} parent=43 // pred_check
          %p341 = pneg %p157
        $region58: #{tpu_custom_call.1} parent=43 // pred_check_branch
          %343 = sbr.rel (%p341) target = $region60
        $region59: #{tpu_custom_call.1} parent=43 // pred_region
          %344 = dma.done %s337, 256
        $region60: #{tpu_custom_call.1} parent=43 // pred_fallthru
          _
        %p345 = pneg %p53
        %p346 = pneg %p50
        %p347 = pneg %p79
        %p348 = pneg %p76
        %s349 = sand.u32 %s20, 1
        %s350 = scalar_lea.sflag [#allocation3], %s349
        %s351 = sand.u32 %s92, 1
        %s352 = smul.addr %s351, 16
        %s353 = scalar_lea.vmem [#allocation7], %s352
        %p354 = pneg %p105
        %p355 = pneg %p102
        %p356 = scmp.lt.s32.totalorder %s25, 3
        %s357 = scalar_select %p356, %s25, 3
        %s358 = scalar_lea.vmem %s3, %s357
        %p359 = pneg %p131
        %p360 = pneg %p128
        %s361 = sand.u32 %s20, 1
        %s362 = scalar_lea.sflag [#allocation3], %s361
        %s363 = sand.u32 %s144, 1
        %s364 = smul.addr %s363, 16
        %s365 = scalar_lea.vmem [#allocation8], %s364
        %p366 = pneg %p157
        %p367 = pneg %p154
        %p368 = scmp.lt.s32.totalorder %s25, 3
        %s369 = scalar_select %p368, %s25, 3
        %s370 = scalar_lea.vmem %s5, %s369
        %p371 = pneg %p183
        %p372 = pneg %p180
        %p373 = pneg %p209
        %p374 = pneg %p206
        %s375 = smul.u32 2, %s24
        %s376 = smul.u32 2, %s24
        %p377 = scmp.lt.s32.totalorder %s25, 3
        %s378 = scalar_select %p377, %s25, 3
        %s379 = scalar_lea.vmem %s3, %s378
        %p380 = scmp.lt.s32.totalorder %s25, 3
        %s381 = scalar_select %p380, %s25, 3
        %s382 = scalar_lea.vmem %s5, %s381
        %s383 = smul.u32 2, %s24
        %p385 = scmp.eq.s32.totalorder %s25, 0
        // Predicated region
        $region61: #{tpu_custom_call.1} parent=43 // pred_check
          %p386 = pneg %p385
        $region62: #{tpu_custom_call.1} parent=43 // pred_check_branch
          %388 = sbr.rel (%p386) target = $region64
        $region63: #{tpu_custom_call.1} parent=43 // pred_region
          %389 = vst [vmem:[#allocation9] sm:$0xff] 0.0
          %390 = vst [vmem:[#allocation9 + $0x8] sm:$0xff] 0.0
        $region64: #{tpu_custom_call.1} parent=43 // pred_fallthru
          _
        %v391 = vld [vmem:[#allocation2] sm:$0xf]
        %v392 = vld [vmem:[#allocation2 + $0x4] sm:$0xf]
        %v393 = vld [vmem:[%s331] sm:$0xf]
        %v394 = vld [vmem:[%s331 + $0x4] sm:$0xf]
        %v395 = vld [vmem:[%s331 + $0x8] sm:$0xf]
        %v396 = vld [vmem:[%s331 + $0xc] sm:$0xf]
        %v397 = vld [vmem:[%s379] sm:$0x1]
        %v399 = vlaneseq
        %v400 = vshrl.u32 %v399, 7
        %v401 = vsub.s32 0, %v400
        %v402 = vrot.slane %v397, %v401
        %v406 = vunpack.c.l.b16 %v391
        %v407 = vunpack.c.l.b16 %v392
        %v408 = vpack.c.b16 %v407, %v406
        %v413 = vunpack.c.l.b16 %v393
        %v414 = vunpack.c.l.b16 %v394
        %v415 = vunpack.c.l.b16 %v395
        %v416 = vunpack.c.l.b16 %v396
        %v417 = vpack.c.b16 %v414, %v413
        %v418 = vpack.c.b16 %v416, %v415
        %vm421 = vcmask 261120
        %v423 = vsel %vm421, %v408, 0
        %425 = vmatprep.subr.bf16.mxu0 0
        %426 = vmatpush1.bf16.msra.mxu0 0
        %427 = vmatprep.subr.bf16.mxu0 0
        %428 = vmatpush1.bf16.msra.mxu0 0
        %429 = vmatprep.subr.bf16.mxu0 0
        %430 = vmatpush1.bf16.msra.mxu0 0
        %431 = vmatprep.subr.bf16.mxu0 0
        %432 = vmatpush1.bf16.msra.mxu0 0
        %433 = vmatprep.subr.bf16.mxu0 0
        %434 = vmatpush1.bf16.msra.mxu0 0
        %435 = vmatprep.subr.bf16.mxu0 0
        %436 = vmatpush1.bf16.msra.mxu0 0
        %437 = vmatprep.subr.bf16.mxu0 0
        %438 = vmatpush1.bf16.msra.mxu0 %v418
        %439 = vmatprep.subr.bf16.mxu0 0
        %440 = vmatpush1.bf16.msra.mxu0 %v417
        %441 = vmatprep.subr.bf16.mxu0 0
        %442 = vmatpush2.bf16.msra.mxu0 0
        %443 = vmatprep.subr.bf16.mxu0 0
        %444 = vmatpush2.bf16.msra.mxu0 0
        %445 = vmatprep.subr.bf16.mxu0 0
        %446 = vmatpush2.bf16.msra.mxu0 0
        %447 = vmatprep.subr.bf16.mxu0 0
        %448 = vmatpush2.bf16.msra.mxu0 0
        %449 = vmatprep.subr.bf16.mxu0 0
        %450 = vmatpush2.bf16.msra.mxu0 0
        %451 = vmatprep.subr.bf16.mxu0 0
        %452 = vmatpush2.bf16.msra.mxu0 0
        %453 = vmatprep.subr.bf16.mxu0 0
        %454 = vmatpush2.bf16.msra.mxu0 0
        %455 = vmatprep.subr.bf16.mxu0 0
        %456 = vmatpush2.bf16.msra.mxu0 0
        %457 = vmatprep.mubr.bf16.mxu0 0
        %458 = vmatmul.mubr.bf16.gmra.mxu0 %v423
        %v459 = vpop.f32.mrf.mxu0
        %v460 = vadd.f32 %v402, %v459
        %v461 = vpop.f32.mrf.mxu0
        %v462 = vpop.f32.mrf.mxu0
        %v463 = vadd.f32 %v402, %v462
        %v464 = vpop.f32.mrf.mxu0
        %465 = vdwg.mxu0
        %v466 = vld [vmem:[#allocation5] sm:$0xf]
        %v467 = vld [vmem:[#allocation5 + $0x4] sm:$0xf]
        %v468 = vld [vmem:[%s340] sm:$0xf]
        %v469 = vld [vmem:[%s340 + $0x4] sm:$0xf]
        %v470 = vld [vmem:[%s340 + $0x8] sm:$0xf]
        %v471 = vld [vmem:[%s340 + $0xc] sm:$0xf]
        %v472 = vld [vmem:[%s382] sm:$0x1]
        %v474 = vlaneseq
        %v475 = vshrl.u32 %v474, 7
        %v476 = vsub.s32 0, %v475
        %v477 = vrot.slane %v472, %v476
        %v481 = vunpack.c.l.b16 %v466
        %v482 = vunpack.c.l.b16 %v467
        %v483 = vpack.c.b16 %v482, %v481
        %v488 = vunpack.c.l.b16 %v468
        %v489 = vunpack.c.l.b16 %v469
        %v490 = vunpack.c.l.b16 %v470
        %v491 = vunpack.c.l.b16 %v471
        %v492 = vpack.c.b16 %v489, %v488
        %v493 = vpack.c.b16 %v491, %v490
        %v497 = vsel %vm421, %v483, 0
        %499 = vmatprep.subr.bf16.mxu0 0
        %500 = vmatpush1.bf16.msra.mxu0 0
        %501 = vmatprep.subr.bf16.mxu0 0
        %502 = vmatpush1.bf16.msra.mxu0 0
        %503 = vmatprep.subr.bf16.mxu0 0
        %504 = vmatpush1.bf16.msra.mxu0 0
        %505 = vmatprep.subr.bf16.mxu0 0
        %506 = vmatpush1.bf16.msra.mxu0 0
        %507 = vmatprep.subr.bf16.mxu0 0
        %508 = vmatpush1.bf16.msra.mxu0 0
        %509 = vmatprep.subr.bf16.mxu0 0
        %510 = vmatpush1.bf16.msra.mxu0 0
        %511 = vmatprep.subr.bf16.mxu0 0
        %512 = vmatpush1.bf16.msra.mxu0 %v493
        %513 = vmatprep.subr.bf16.mxu0 0
        %514 = vmatpush1.bf16.msra.mxu0 %v492
        %515 = vmatprep.subr.bf16.mxu0 0
        %516 = vmatpush2.bf16.msra.mxu0 0
        %517 = vmatprep.subr.bf16.mxu0 0
        %518 = vmatpush2.bf16.msra.mxu0 0
        %519 = vmatprep.subr.bf16.mxu0 0
        %520 = vmatpush2.bf16.msra.mxu0 0
        %521 = vmatprep.subr.bf16.mxu0 0
        %522 = vmatpush2.bf16.msra.mxu0 0
        %523 = vmatprep.subr.bf16.mxu0 0
        %524 = vmatpush2.bf16.msra.mxu0 0
        %525 = vmatprep.subr.bf16.mxu0 0
        %526 = vmatpush2.bf16.msra.mxu0 0
        %527 = vmatprep.subr.bf16.mxu0 0
        %528 = vmatpush2.bf16.msra.mxu0 0
        %529 = vmatprep.subr.bf16.mxu0 0
        %530 = vmatpush2.bf16.msra.mxu0 0
        %531 = vmatprep.mubr.bf16.mxu0 0
        %532 = vmatmul.mubr.bf16.gmra.mxu0 %v497
        %v533 = vpop.f32.mrf.mxu0
        %v534 = vadd.f32 %v477, %v533
        %v535 = vpop.f32.mrf.mxu0
        %v536 = vpop.f32.mrf.mxu0
        %v537 = vadd.f32 %v477, %v536
        %v538 = vpop.f32.mrf.mxu0
        %539 = vdwg.mxu0
        %v540 = vld [vmem:[#allocation9] sm:$0xff]
        %v541 = vld [vmem:[#allocation9 + $0x8] sm:$0xff]
        %v542 = vmul.f32 %v460, %v534
        %v543 = vmul.f32 %v463, %v537
        %v544 = vadd.f32 %v540, %v542
        %v545 = vadd.f32 %v541, %v543
        %546 = vst [vmem:[#allocation9] sm:$0xff] %v544
        %547 = vst [vmem:[#allocation9 + $0x8] sm:$0xff] %v545
        %p548 = scmp.eq.s32.totalorder %s25, 3
        // Predicated region
        $region65: #{tpu_custom_call.1} parent=43 // pred_check
          %p549 = pneg %p548
        $region66: #{tpu_custom_call.1} parent=43 // pred_check_branch
          %551 = sbr.rel (%p549) target = $region68
        $region67: #{tpu_custom_call.1} parent=43 // pred_region
          %v552 = vld [vmem:[#allocation9] sm:$0xff]
          %v553 = vld [vmem:[#allocation9 + $0x8] sm:$0xff]
          %v554 = vmul.f32 %v552, %v552
          %v555 = vmul.f32 %v553, %v553
          %556 = vadd.xlane.f32.xlu0 %v554
          %v557 = vpop.xlane.xlu0 %556
          %558 = vadd.xlane.f32.xlu0 %v555
          %v559 = vpop.xlane.xlu0 %558
          %v560 = vmax.f32 %v557, 1e-24
          %v561 = vmax.f32 %v559, 1e-24
          %v562 = vrsqrt.pop %v560
          %v563 = vrsqrt.pop %v561
          %v564 = vmul.f32 %v552, %v562
          %v565 = vmul.f32 %v553, %v563
          %566 = vst [vmem:[#allocation9] sm:$0xff] %v564
          %567 = vst [vmem:[#allocation9 + $0x8] sm:$0xff] %v565
        $region68: #{tpu_custom_call.1} parent=43 // pred_fallthru
          _
        // Predicated region
        $region69: #{tpu_custom_call.1} parent=43 // pred_check
          %p568 = pneg %p206
        $region70: #{tpu_custom_call.1} parent=43 // pred_check_branch
          %570 = sbr.rel (%p568) target = $region72
        $region71: #{tpu_custom_call.1} parent=43 // pred_region
          %s571 = smul.u32 2, %s24
          %s573 = ssub.s32 256, 256
          %574 = vsyncadd [#allocation4], %s573
          %s575 = smul.addr %s571, 128
          %s576 = scalar_lea.hbm %s6, %s575
          %s577 = sshll.u32 [#allocation9], 4
          %s578 = int_to_ptr.vmem [resolvable:$true] %s577
          %583 = dma.vmem_to_hbm [thread:$0]  %s578, 256, %s576, [#allocation4], 128, 128, 8
        $region72: #{tpu_custom_call.1} parent=43 // pred_fallthru
          _
        // Predicated region
        $region73: #{tpu_custom_call.1} parent=43 // pred_check
          %p584 = pneg %p206
        $region74: #{tpu_custom_call.1} parent=43 // pred_check_branch
          %586 = sbr.rel (%p584) target = $region76
        $region75: #{tpu_custom_call.1} parent=43 // pred_region
          %587 = dma.done [#allocation4], 256
        $region76: #{tpu_custom_call.1} parent=43 // pred_fallthru
          _
      $region44: #{tpu_custom_call.1} parent=5 // pred_fallthru
        _
      %p588 = scmp.le.s32.totalorder 2, %s15
      // Predicated region
      $region77: #{tpu_custom_call.1} parent=5 // pred_check
        %p589 = pneg %p588
      $region78: #{tpu_custom_call.1} parent=5 // pred_check_branch
        %591 = sbr.rel (%p589) target = $region80
      $region79: #{tpu_custom_call.1} parent=5 // pred_region
        %s592 = ssub.s32 %s15, 2
      $region80: #{tpu_custom_call.1} parent=5 // pred_fallthru
        _
    $region6: #{tpu_custom_call.1} parent=1 // loop_footer
      %s19 = sadd.s32 1, %s15
    $region7: #{tpu_custom_call.1} parent=1 // loop_footer_branch
      %14 = sbr.rel target = $region3
    $region8: #{tpu_custom_call.1} parent=1 // loop_exit
      _
    %593 = vsyncpa [#allocation3], 1
    %s594 = scalar_lea.sflag [#allocation3], 1
    %595 = vsyncpa %s594, 1
    %596 = vsyncpa [#allocation6], 1
    %597 = vsyncpa [#allocation4], 1
    %s598 = scalar_lea.sflag [#allocation4], 1
    %599 = vsyncpa %s598, 1

</llo_original>
